<compile_context>
chip_gen: v7x
topology: tpu7x:2x2x1
jax: 0.10.0
libtpu: 0.0.40
codegen_flags: <defaults>
</compile_context>

<pallas_src>
import functools

import jax
import jax.numpy as jnp
from jax.experimental import pallas as pl
from jax.experimental.pallas import tpu as pltpu

HIDDEN = 64            # width of fc1/fc2/fc3
LANE = 128             # TPU lane width (batch-tile alignment in feature-major layout)
SUBLANE = 8            # TPU sublane width (action-dim padding)
TB_MAX_DEFAULT = 2048  # max batch lanes per tile


def _round_up(n, m):
    return ((n + m - 1) // m) * m


def _cdiv(a, b):
    return (a + b - 1) // b


def dqn_kernel(xt_ref, w1t_ref, w2t_ref, w3t_ref, w4t_ref,
               b1_ref, b2_ref, b3_ref, b4_ref, o_ref):
    """Feature-major fused DQN forward.

    xt_ref : (S, TB)      f32   input activations, batch on the lane axis
    w*t_ref: (out, in)    bf16  transposed weights (resident across the batch grid)
    b*_ref : (out, 1)     f32   column biases (lane-broadcast adds)
    o_ref  : (A_pad, TB)  f32   Q-values, batch on the lane axis
    """
    bf16 = jnp.bfloat16
    f32 = jnp.float32

    # fc1 + ReLU   (bf16 MXU inputs, f32 accumulate / elementwise)
    h = jnp.dot(w1t_ref[...], xt_ref[...].astype(bf16), preferred_element_type=f32)
    h = jnp.maximum(h + b1_ref[...], 0.0)
    # fc2 + ReLU
    h = jnp.dot(w2t_ref[...], h.astype(bf16), preferred_element_type=f32)
    h = jnp.maximum(h + b2_ref[...], 0.0)
    # fc3 + ReLU
    h = jnp.dot(w3t_ref[...], h.astype(bf16), preferred_element_type=f32)
    h = jnp.maximum(h + b3_ref[...], 0.0)
    # fc4 (no activation); sublane rows >= action_size are zero by construction
    out = jnp.dot(w4t_ref[...], h.astype(bf16), preferred_element_type=f32)
    o_ref[...] = (out + b4_ref[...]).astype(o_ref.dtype)


def _pick_batch_tile(b, tb_max):
    """Lane-aligned (multiple-of-128) batch tile; prefers an EVEN grid (v7x megacore)."""
    b128 = _round_up(b, LANE)
    if b128 <= LANE:
        return LANE, 1
    half = _round_up(_cdiv(b128, 2), LANE)
    if half <= tb_max:
        tb = half                      # exactly two balanced tiles
    else:
        n = _cdiv(b128, tb_max)
        if n % 2:
            n += 1                     # keep the parallel grid even
        tb = _round_up(_cdiv(b128, n), LANE)
    grid_n = _cdiv(b128, tb)
    return tb, grid_n


def prepare_dqn_params(params):
    """One-time parameter prep (hoisted out of the per-call path).

    Transposes weights to feature-major [out, in] bf16, pads the fc4 output dim to
    a sublane multiple, and reshapes biases into broadcastable f32 columns."""
    A = params["w4"].shape[1]
    a_pad = _round_up(A, SUBLANE)
    return {
        "w1t": params["w1"].T.astype(jnp.bfloat16),
        "w2t": params["w2"].T.astype(jnp.bfloat16),
        "w3t": params["w3"].T.astype(jnp.bfloat16),
        "w4t": jnp.pad(params["w4"].T.astype(jnp.bfloat16), ((0, a_pad - A), (0, 0))),
        "b1": params["b1"].reshape(HIDDEN, 1).astype(jnp.float32),
        "b2": params["b2"].reshape(HIDDEN, 1).astype(jnp.float32),
        "b3": params["b3"].reshape(HIDDEN, 1).astype(jnp.float32),
        "b4": jnp.pad(params["b4"].reshape(A, 1).astype(jnp.float32),
                      ((0, a_pad - A), (0, 0))),
    }


@functools.partial(jax.jit, static_argnames=("action_size", "tb_max"))
def dqn_forward(x, prepped, *, action_size, tb_max=TB_MAX_DEFAULT):
    """x: [B, state_size] f32. prepped: output of prepare_dqn_params.
    Returns [B, action_size] f32 Q-values."""
    B, S = x.shape
    w1t, w2t, w3t, w4t = prepped["w1t"], prepped["w2t"], prepped["w3t"], prepped["w4t"]
    b1, b2, b3, b4 = prepped["b1"], prepped["b2"], prepped["b3"], prepped["b4"]
    a_pad = w4t.shape[0]

    tb, grid_n = _pick_batch_tile(B, tb_max)
    B_pad = tb * grid_n

    # Feature-major input: [S, B_pad], batch on lanes, zero-padded lanes past B.
    xt = jnp.pad(x.T, ((0, 0), (0, B_pad - B)))

    def const_spec(shape):
        # Whole array as one block, same block every grid step -> stays resident.
        return pl.BlockSpec(shape, lambda i: (0,) * len(shape))

    flops = 2 * B_pad * (S * HIDDEN + 2 * HIDDEN * HIDDEN + HIDDEN * a_pad)
    bytes_accessed = (xt.size * 4
                      + (w1t.size + w2t.size + w3t.size + w4t.size) * 2
                      + (b1.size + b2.size + b3.size + b4.size) * 4
                      + a_pad * B_pad * 4)

    out_t = pl.pallas_call(
        dqn_kernel,
        out_shape=jax.ShapeDtypeStruct((a_pad, B_pad), jnp.float32),
        grid=(grid_n,),
        in_specs=[
            pl.BlockSpec((S, tb), lambda i: (0, i)),   # x^T tiled over batch lanes
            const_spec(w1t.shape), const_spec(w2t.shape),
            const_spec(w3t.shape), const_spec(w4t.shape),
            const_spec(b1.shape), const_spec(b2.shape),
            const_spec(b3.shape), const_spec(b4.shape),
        ],
        out_specs=pl.BlockSpec((a_pad, tb), lambda i: (0, i)),
        compiler_params=pltpu.CompilerParams(
            dimension_semantics=("parallel",)),
        cost_estimate=pl.CostEstimate(
            flops=flops, transcendentals=0, bytes_accessed=bytes_accessed),
    )(xt, w1t, w2t, w3t, w4t, b1, b2, b3, b4)

    # Drop padded action rows / padded batch lanes, back to [B, action_size].
    return out_t[:action_size, :B].T


def init_dqn_params(key, state_size, action_size):
    """Matches nn.Linear default init U(-1/sqrt(fan_in), 1/sqrt(fan_in)).
    Weights kept as [in, out] f32 (so x @ W == PyTorch x @ W.T)."""
    dims = [(state_size, HIDDEN), (HIDDEN, HIDDEN), (HIDDEN, HIDDEN), (HIDDEN, action_size)]
    params = {}
    for idx, (fan_in, fan_out) in enumerate(dims, start=1):
        key, kw, kb = jax.random.split(key, 3)
        bound = 1.0 / (fan_in ** 0.5)
        params[f"w{idx}"] = jax.random.uniform(kw, (fan_in, fan_out), jnp.float32, -bound, bound)
        params[f"b{idx}"] = jax.random.uniform(kb, (fan_out,), jnp.float32, -bound, bound)
    return params


def dqn_reference_bf16(x, params):
    """Mirrors the kernel numerics: bf16 matmul inputs, f32 accumulate/bias/ReLU."""
    def layer(h, w, b, relu):
        z = jnp.dot(h.astype(jnp.bfloat16), w.astype(jnp.bfloat16),
                    preferred_element_type=jnp.float32) + b
        return jnp.maximum(z, 0.0) if relu else z
    h = layer(x, params["w1"], params["b1"], True)
    h = layer(h, params["w2"], params["b2"], True)
    h = layer(h, params["w3"], params["b3"], True)
    return layer(h, params["w4"], params["b4"], False)


def dqn_reference_f32(x, params):
    """Full-precision reference of the original PyTorch module semantics."""
    def layer(h, w, b, relu):
        z = h @ w + b
        return jnp.maximum(z, 0.0) if relu else z
    h = layer(x, params["w1"], params["b1"], True)
    h = layer(h, params["w2"], params["b2"], True)
    h = layer(h, params["w3"], params["b3"], True)
    return layer(h, params["w4"], params["b4"], False)


if __name__ == "__main__":
    state_size = 8     # ball-balancing observation vector
    action_size = 4

    key = jax.random.PRNGKey(0)
    key, kp = jax.random.split(key)
    params = init_dqn_params(kp, state_size, action_size)
    prepped = prepare_dqn_params(params)   # one-time prep, outside the per-call path

    # Small per-step case (B=2) and a replay-buffer-sized batch that exercises a
    # multi-tile (even, balanced) batch grid and the padding/slicing path.
    for batch in (2, 1200):
        key, kx = jax.random.split(key)
        x = jax.random.normal(kx, (batch, state_size), jnp.float32)

        out = jax.block_until_ready(dqn_forward(x, prepped, action_size=action_size))
        assert out.shape == (batch, action_size)

        ref_bf16 = dqn_reference_bf16(x, params)
        assert jnp.allclose(out, ref_bf16, atol=2e-3, rtol=2e-3), \
            f"mismatch vs bf16 reference at batch={batch}"

        ref_f32 = dqn_reference_f32(x, params)
        assert jnp.allclose(out, ref_f32, atol=1e-1, rtol=1e-1), \
            f"mismatch vs f32 reference at batch={batch}"

    print("KERNEL_OK")
</pallas_src>

<mosaic_0001>
module attributes {stable_mosaic.version = 11 : i64} {
  func.func @dqn_kernel(%arg0: i32, %arg1: memref<8x128xf32, #tpu.memory_space<vmem>>, %arg2: memref<64x8xbf16, #tpu.memory_space<vmem>>, %arg3: memref<64x64xbf16, #tpu.memory_space<vmem>>, %arg4: memref<64x64xbf16, #tpu.memory_space<vmem>>, %arg5: memref<8x64xbf16, #tpu.memory_space<vmem>>, %arg6: memref<64x1xf32, #tpu.memory_space<vmem>>, %arg7: memref<64x1xf32, #tpu.memory_space<vmem>>, %arg8: memref<64x1xf32, #tpu.memory_space<vmem>>, %arg9: memref<8x1xf32, #tpu.memory_space<vmem>>, %arg10: memref<8x128xf32, #tpu.memory_space<vmem>>) attributes {dimension_semantics = [#tpu.dimension_semantics<parallel>], iteration_bounds = array<i64: 1>, scalar_prefetch = 0 : i64, scratch_operands = 0 : i64, tpu.core_type = #tpu.core_type<tc>, window_params = [{transform_indices = @transform_0, window_bounds = array<i64: 8, 128>}, {pipeline_mode = #tpu.pipeline_mode<synchronous>, transform_indices = @transform_1, window_bounds = array<i64: 64, 8>}, {pipeline_mode = #tpu.pipeline_mode<synchronous>, transform_indices = @transform_2, window_bounds = array<i64: 64, 64>}, {pipeline_mode = #tpu.pipeline_mode<synchronous>, transform_indices = @transform_3, window_bounds = array<i64: 64, 64>}, {pipeline_mode = #tpu.pipeline_mode<synchronous>, transform_indices = @transform_4, window_bounds = array<i64: 8, 64>}, {pipeline_mode = #tpu.pipeline_mode<synchronous>, transform_indices = @transform_5, window_bounds = array<i64: 64, 1>}, {pipeline_mode = #tpu.pipeline_mode<synchronous>, transform_indices = @transform_6, window_bounds = array<i64: 64, 1>}, {pipeline_mode = #tpu.pipeline_mode<synchronous>, transform_indices = @transform_7, window_bounds = array<i64: 64, 1>}, {pipeline_mode = #tpu.pipeline_mode<synchronous>, transform_indices = @transform_8, window_bounds = array<i64: 8, 1>}, {transform_indices = @transform_9, window_bounds = array<i64: 8, 128>}]} {
    %c0 = arith.constant 0 : index
    %c0_0 = arith.constant 0 : index
    %0 = vector.load %arg2[%c0, %c0_0] : memref<64x8xbf16, #tpu.memory_space<vmem>>, vector<64x8xbf16>
    %c0_1 = arith.constant 0 : index
    %c0_2 = arith.constant 0 : index
    %1 = vector.load %arg1[%c0_1, %c0_2] : memref<8x128xf32, #tpu.memory_space<vmem>>, vector<8x128xf32>
    %2 = arith.truncf %1 : vector<8x128xf32> to vector<8x128xbf16>
    %cst = arith.constant dense<0.000000e+00> : vector<64x128xf32>
    %3 = tpu.matmul %0, %2, %cst {dimension_numbers = #tpu.dot_dimension_numbers<[1], [0], [0], [1], [0, 0, 1, 1], [], []>} : vector<64x8xbf16>, vector<8x128xbf16>, vector<64x128xf32> -> vector<64x128xf32>
    %c0_3 = arith.constant 0 : index
    %c0_4 = arith.constant 0 : index
    %4 = vector.load %arg6[%c0_3, %c0_4] : memref<64x1xf32, #tpu.memory_space<vmem>>, vector<64x1xf32>
    %5 = vector.broadcast %4 : vector<64x1xf32> to vector<64x128xf32>
    %6 = arith.addf %3, %5 : vector<64x128xf32>
    %cst_5 = arith.constant 0.000000e+00 : f32
    %7 = vector.broadcast %cst_5 : f32 to vector<64x128xf32>
    %8 = arith.maximumf %6, %7 : vector<64x128xf32>
    %c0_6 = arith.constant 0 : index
    %c0_7 = arith.constant 0 : index
    %9 = vector.load %arg3[%c0_6, %c0_7] : memref<64x64xbf16, #tpu.memory_space<vmem>>, vector<64x64xbf16>
    %10 = arith.truncf %8 : vector<64x128xf32> to vector<64x128xbf16>
    %cst_8 = arith.constant dense<0.000000e+00> : vector<64x128xf32>
    %11 = tpu.matmul %9, %10, %cst_8 {dimension_numbers = #tpu.dot_dimension_numbers<[1], [0], [0], [1], [0, 0, 1, 1], [], []>} : vector<64x64xbf16>, vector<64x128xbf16>, vector<64x128xf32> -> vector<64x128xf32>
    %c0_9 = arith.constant 0 : index
    %c0_10 = arith.constant 0 : index
    %12 = vector.load %arg7[%c0_9, %c0_10] : memref<64x1xf32, #tpu.memory_space<vmem>>, vector<64x1xf32>
    %13 = vector.broadcast %12 : vector<64x1xf32> to vector<64x128xf32>
    %14 = arith.addf %11, %13 : vector<64x128xf32>
    %cst_11 = arith.constant 0.000000e+00 : f32
    %15 = vector.broadcast %cst_11 : f32 to vector<64x128xf32>
    %16 = arith.maximumf %14, %15 : vector<64x128xf32>
    %c0_12 = arith.constant 0 : index
    %c0_13 = arith.constant 0 : index
    %17 = vector.load %arg4[%c0_12, %c0_13] : memref<64x64xbf16, #tpu.memory_space<vmem>>, vector<64x64xbf16>
    %18 = arith.truncf %16 : vector<64x128xf32> to vector<64x128xbf16>
    %cst_14 = arith.constant dense<0.000000e+00> : vector<64x128xf32>
    %19 = tpu.matmul %17, %18, %cst_14 {dimension_numbers = #tpu.dot_dimension_numbers<[1], [0], [0], [1], [0, 0, 1, 1], [], []>} : vector<64x64xbf16>, vector<64x128xbf16>, vector<64x128xf32> -> vector<64x128xf32>
    %c0_15 = arith.constant 0 : index
    %c0_16 = arith.constant 0 : index
    %20 = vector.load %arg8[%c0_15, %c0_16] : memref<64x1xf32, #tpu.memory_space<vmem>>, vector<64x1xf32>
    %21 = vector.broadcast %20 : vector<64x1xf32> to vector<64x128xf32>
    %22 = arith.addf %19, %21 : vector<64x128xf32>
    %cst_17 = arith.constant 0.000000e+00 : f32
    %23 = vector.broadcast %cst_17 : f32 to vector<64x128xf32>
    %24 = arith.maximumf %22, %23 : vector<64x128xf32>
    %c0_18 = arith.constant 0 : index
    %c0_19 = arith.constant 0 : index
    %25 = vector.load %arg5[%c0_18, %c0_19] : memref<8x64xbf16, #tpu.memory_space<vmem>>, vector<8x64xbf16>
    %26 = arith.truncf %24 : vector<64x128xf32> to vector<64x128xbf16>
    %cst_20 = arith.constant dense<0.000000e+00> : vector<8x128xf32>
    %27 = tpu.matmul %25, %26, %cst_20 {dimension_numbers = #tpu.dot_dimension_numbers<[1], [0], [0], [1], [0, 0, 1, 1], [], []>} : vector<8x64xbf16>, vector<64x128xbf16>, vector<8x128xf32> -> vector<8x128xf32>
    %c0_21 = arith.constant 0 : index
    %c0_22 = arith.constant 0 : index
    %28 = vector.load %arg9[%c0_21, %c0_22] : memref<8x1xf32, #tpu.memory_space<vmem>>, vector<8x1xf32>
    %29 = vector.broadcast %28 : vector<8x1xf32> to vector<8x128xf32>
    %30 = arith.addf %27, %29 : vector<8x128xf32>
    %c0_23 = arith.constant 0 : index
    %c0_24 = arith.constant 0 : index
    %31 = vector.load %arg10[%c0_23, %c0_24] : memref<8x128xf32, #tpu.memory_space<vmem>>, vector<8x128xf32>
    tpu.vector_store %arg10[%c0_23, %c0_24], %30 {strides = array<i32>} : memref<8x128xf32, #tpu.memory_space<vmem>>, vector<8x128xf32>,
    return
  }
  func.func @transform_0(%arg0: i32) -> (i32, i32) {
    %c0_i32 = arith.constant 0 : i32
    %c0_i32_0 = arith.constant 0 : i32
    return %c0_i32, %arg0 : i32, i32
  }
  func.func @transform_1(%arg0: i32) -> (i32, i32) {
    %c0_i32 = arith.constant 0 : i32
    %c0_i32_0 = arith.constant 0 : i32
    %c0_i32_1 = arith.constant 0 : i32
    return %c0_i32, %c0_i32_0 : i32, i32
  }
  func.func @transform_2(%arg0: i32) -> (i32, i32) {
    %c0_i32 = arith.constant 0 : i32
    %c0_i32_0 = arith.constant 0 : i32
    %c0_i32_1 = arith.constant 0 : i32
    return %c0_i32, %c0_i32_0 : i32, i32
  }
  func.func @transform_3(%arg0: i32) -> (i32, i32) {
    %c0_i32 = arith.constant 0 : i32
    %c0_i32_0 = arith.constant 0 : i32
    %c0_i32_1 = arith.constant 0 : i32
    return %c0_i32, %c0_i32_0 : i32, i32
  }
  func.func @transform_4(%arg0: i32) -> (i32, i32) {
    %c0_i32 = arith.constant 0 : i32
    %c0_i32_0 = arith.constant 0 : i32
    %c0_i32_1 = arith.constant 0 : i32
    return %c0_i32, %c0_i32_0 : i32, i32
  }
  func.func @transform_5(%arg0: i32) -> (i32, i32) {
    %c0_i32 = arith.constant 0 : i32
    %c0_i32_0 = arith.constant 0 : i32
    %c0_i32_1 = arith.constant 0 : i32
    return %c0_i32, %c0_i32_0 : i32, i32
  }
  func.func @transform_6(%arg0: i32) -> (i32, i32) {
    %c0_i32 = arith.constant 0 : i32
    %c0_i32_0 = arith.constant 0 : i32
    %c0_i32_1 = arith.constant 0 : i32
    return %c0_i32, %c0_i32_0 : i32, i32
  }
  func.func @transform_7(%arg0: i32) -> (i32, i32) {
    %c0_i32 = arith.constant 0 : i32
    %c0_i32_0 = arith.constant 0 : i32
    %c0_i32_1 = arith.constant 0 : i32
    return %c0_i32, %c0_i32_0 : i32, i32
  }
  func.func @transform_8(%arg0: i32) -> (i32, i32) {
    %c0_i32 = arith.constant 0 : i32
    %c0_i32_0 = arith.constant 0 : i32
    %c0_i32_1 = arith.constant 0 : i32
    return %c0_i32, %c0_i32_0 : i32, i32
  }
  func.func @transform_9(%arg0: i32) -> (i32, i32) {
    %c0_i32 = arith.constant 0 : i32
    %c0_i32_0 = arith.constant 0 : i32
    return %c0_i32, %arg0 : i32, i32
  }
}

</mosaic_0001>

<llo_original>
// kernel: dqn_forward.1
$region0: #{dqn_forward.1}
  #allocation0 [shape = 'u32[]', space=smem, size = 0x4, offset = 0x4, fixed_abs, tag = 'smem constant byte address 0x4 - core index']
  #allocation1 [shape = 'u32[144,128]{1,0:T(1,128)}', space=vmem, size = 0x12000, scoped, tag = 'internal scratch']
  %s0 = inlined_call_operand.vmem [shape: f32[8,128], index: 0, kind: input, shape index: {}]
  %s1 = inlined_call_operand.vmem [shape: bf16[64,8], index: 1, kind: input, shape index: {}]
  %s2 = inlined_call_operand.vmem [shape: bf16[64,64], index: 2, kind: input, shape index: {}]
  %s3 = inlined_call_operand.vmem [shape: bf16[64,64], index: 3, kind: input, shape index: {}]
  %s4 = inlined_call_operand.vmem [shape: bf16[8,64], index: 4, kind: input, shape index: {}]
  %s5 = inlined_call_operand.vmem [shape: f32[64,1], index: 5, kind: input, shape index: {}]
  %s6 = inlined_call_operand.vmem [shape: f32[64,1], index: 6, kind: input, shape index: {}]
  %s7 = inlined_call_operand.vmem [shape: f32[64,1], index: 7, kind: input, shape index: {}]
  %s8 = inlined_call_operand.vmem [shape: f32[8,1], index: 8, kind: input, shape index: {}]
  %s9 = inlined_call_operand.vmem [shape: f32[8,128], index: 9, kind: output, shape index: {}]
  %s10 = sld [smem:[#allocation0]]
  $region46: #{dqn_forward.1} parent=0
    _
  %s12 = ssub.s32 1, %s10
  %s13 = scalar_select 0, %s12, %s10
  // Predicated region
  $region2: #{dqn_forward.1} parent=0 // pred_check
    _
  $region3: #{dqn_forward.1} parent=0 // pred_check_branch
    %15 = sbr.rel (0) target = $region5
  $region4: #{dqn_forward.1} parent=0 // pred_region
    _
  $region5: #{dqn_forward.1} parent=0 // pred_fallthru
    _
  // Predicated region
  $region6: #{dqn_forward.1} parent=0 // pred_check
    _
  $region7: #{dqn_forward.1} parent=0 // pred_check_branch
    %17 = sbr.rel (0) target = $region9
  $region8: #{dqn_forward.1} parent=0 // pred_region
    _
  $region9: #{dqn_forward.1} parent=0 // pred_fallthru
    _
  // Predicated region
  $region10: #{dqn_forward.1} parent=0 // pred_check
    _
  $region11: #{dqn_forward.1} parent=0 // pred_check_branch
    %19 = sbr.rel (0) target = $region13
  $region12: #{dqn_forward.1} parent=0 // pred_region
    _
  $region13: #{dqn_forward.1} parent=0 // pred_fallthru
    _
  // Predicated region
  $region14: #{dqn_forward.1} parent=0 // pred_check
    _
  $region15: #{dqn_forward.1} parent=0 // pred_check_branch
    %21 = sbr.rel (0) target = $region17
  $region16: #{dqn_forward.1} parent=0 // pred_region
    _
  $region17: #{dqn_forward.1} parent=0 // pred_fallthru
    _
  // Predicated region
  $region18: #{dqn_forward.1} parent=0 // pred_check
    _
  $region19: #{dqn_forward.1} parent=0 // pred_check_branch
    %23 = sbr.rel (0) target = $region21
  $region20: #{dqn_forward.1} parent=0 // pred_region
    _
  $region21: #{dqn_forward.1} parent=0 // pred_fallthru
    _
  // Predicated region
  $region22: #{dqn_forward.1} parent=0 // pred_check
    _
  $region23: #{dqn_forward.1} parent=0 // pred_check_branch
    %25 = sbr.rel (0) target = $region25
  $region24: #{dqn_forward.1} parent=0 // pred_region
    _
  $region25: #{dqn_forward.1} parent=0 // pred_fallthru
    _
  // Predicated region
  $region26: #{dqn_forward.1} parent=0 // pred_check
    _
  $region27: #{dqn_forward.1} parent=0 // pred_check_branch
    %27 = sbr.rel (0) target = $region29
  $region28: #{dqn_forward.1} parent=0 // pred_region
    _
  $region29: #{dqn_forward.1} parent=0 // pred_fallthru
    _
  // Predicated region
  $region30: #{dqn_forward.1} parent=0 // pred_check
    _
  $region31: #{dqn_forward.1} parent=0 // pred_check_branch
    %29 = sbr.rel (0) target = $region33
  $region32: #{dqn_forward.1} parent=0 // pred_region
    _
  $region33: #{dqn_forward.1} parent=0 // pred_fallthru
    _
  // Predicated region
  $region34: #{dqn_forward.1} parent=0 // pred_check
    _
  $region35: #{dqn_forward.1} parent=0 // pred_check_branch
    %31 = sbr.rel (0) target = $region37
  $region36: #{dqn_forward.1} parent=0 // pred_region
    _
  $region37: #{dqn_forward.1} parent=0 // pred_fallthru
    _
  %v33 = vld [vmem:[%s1] sm:$0xf]
  %v34 = vld [vmem:[%s1 + $0x4] sm:$0xf]
  %v35 = vld [vmem:[%s1 + $0x8] sm:$0xf]
  %v36 = vld [vmem:[%s1 + $0xc] sm:$0xf]
  %v37 = vld [vmem:[%s1 + $0x10] sm:$0xf]
  %v38 = vld [vmem:[%s1 + $0x14] sm:$0xf]
  %v39 = vld [vmem:[%s1 + $0x18] sm:$0xf]
  %v40 = vld [vmem:[%s1 + $0x1c] sm:$0xf]
  %v41 = vld [vmem:[%s0] sm:$0xff]
  %v42 = vpack.c.bf16 %v41, %v41
  %v43 = vld [vmem:[%s5] sm:$0xff]
  %v44 = vld [vmem:[%s5 + $0x8] sm:$0xff]
  %v45 = vld [vmem:[%s5 + $0x10] sm:$0xff]
  %v46 = vld [vmem:[%s5 + $0x18] sm:$0xff]
  %v47 = vld [vmem:[%s5 + $0x20] sm:$0xff]
  %v48 = vld [vmem:[%s5 + $0x28] sm:$0xff]
  %v49 = vld [vmem:[%s5 + $0x30] sm:$0xff]
  %v50 = vld [vmem:[%s5 + $0x38] sm:$0xff]
  %52 = vset.pattern.permute.xlu0 0
  %53 = vperm.xlu0 %52, %v43
  %v54 = vpop.permute.xlu0 %53
  %57 = vset.pattern.permute.xlu0 0
  %58 = vperm.xlu0 %57, %v44
  %v59 = vpop.permute.xlu0 %58
  %62 = vset.pattern.permute.xlu0 0
  %63 = vperm.xlu0 %62, %v45
  %v64 = vpop.permute.xlu0 %63
  %67 = vset.pattern.permute.xlu0 0
  %68 = vperm.xlu0 %67, %v46
  %v69 = vpop.permute.xlu0 %68
  %72 = vset.pattern.permute.xlu0 0
  %73 = vperm.xlu0 %72, %v47
  %v74 = vpop.permute.xlu0 %73
  %77 = vset.pattern.permute.xlu0 0
  %78 = vperm.xlu0 %77, %v48
  %v79 = vpop.permute.xlu0 %78
  %82 = vset.pattern.permute.xlu0 0
  %83 = vperm.xlu0 %82, %v49
  %v84 = vpop.permute.xlu0 %83
  %87 = vset.pattern.permute.xlu0 0
  %88 = vperm.xlu0 %87, %v50
  %v89 = vpop.permute.xlu0 %88
  %v99 = vunpack.c.l.b16 %v33
  %v100 = vunpack.c.l.b16 %v34
  %v101 = vunpack.c.l.b16 %v35
  %v102 = vunpack.c.l.b16 %v36
  %v103 = vunpack.c.l.b16 %v37
  %v104 = vunpack.c.l.b16 %v38
  %v105 = vunpack.c.l.b16 %v39
  %v106 = vunpack.c.l.b16 %v40
  %v107 = vpack.c.b16 %v100, %v99
  %v108 = vpack.c.b16 %v102, %v101
  %v109 = vpack.c.b16 %v104, %v103
  %v110 = vpack.c.b16 %v106, %v105
  %vm111 = vcmask 64512
  %v113 = vsel %vm111, %v107, 0
  %v116 = vsel %vm111, %v108, 0
  %v119 = vsel %vm111, %v109, 0
  %v122 = vsel %vm111, %v110, 0
  %vm124 = vcmask 1043456
  %v126 = vsel %vm124, %v42, 0
  %128 = vmatprep.subr.bf16.mxu0 0
  %129 = vmatpush1.bf16.msra.mxu0 %v126
  %130 = vmatprep.subr.bf16.mxu0 0
  %131 = vmatpush1.bf16.msra.mxu0 0
  %132 = vmatprep.subr.bf16.mxu0 0
  %133 = vmatpush1.bf16.msra.mxu0 0
  %134 = vmatprep.subr.bf16.mxu0 0
  %135 = vmatpush1.bf16.msra.mxu0 0
  %136 = vmatprep.subr.bf16.mxu0 0
  %137 = vmatpush1.bf16.msra.mxu0 0
  %138 = vmatprep.subr.bf16.mxu0 0
  %139 = vmatpush1.bf16.msra.mxu0 0
  %140 = vmatprep.subr.bf16.mxu0 0
  %141 = vmatpush1.bf16.msra.mxu0 0
  %142 = vmatprep.subr.bf16.mxu0 0
  %143 = vmatpush1.bf16.msra.mxu0 0
  %144 = vmatprep.subr.bf16.mxu0 0
  %145 = vmatpush1.bf16.msra.mxu0 0
  %146 = vmatprep.subr.bf16.mxu0 0
  %147 = vmatpush1.bf16.msra.mxu0 0
  %148 = vmatprep.subr.bf16.mxu0 0
  %149 = vmatpush1.bf16.msra.mxu0 0
  %150 = vmatprep.subr.bf16.mxu0 0
  %151 = vmatpush1.bf16.msra.mxu0 0
  %152 = vmatprep.subr.bf16.mxu0 0
  %153 = vmatpush1.bf16.msra.mxu0 0
  %154 = vmatprep.subr.bf16.mxu0 0
  %155 = vmatpush1.bf16.msra.mxu0 0
  %156 = vmatprep.subr.bf16.mxu0 0
  %157 = vmatpush1.bf16.msra.mxu0 0
  %158 = vmatprep.subr.bf16.mxu0 0
  %159 = vmatpush1.bf16.msra.mxu0 0
  %160 = vmatprep.mubr.bf16.mxu0 0
  %161 = vmatmul.mubr.bf16.gmra.mrb[0].mxu0 %v113
  %v162 = vpop.f32.mrb[0].mxu0
  %v163 = vadd.f32 %v54, %v162
  %v164 = vpop.f32.mrb[0].mxu0
  %v165 = vpop.f32.mrb[0].mxu0
  %v166 = vadd.f32 %v59, %v165
  %v167 = vpop.f32.mrb[0].mxu0
  %168 = vmatprep.mubr.bf16.mxu0 0
  %169 = vmatmul.mubr.bf16.gmra.mrb[0].mxu0 %v116
  %v170 = vpop.f32.mrb[0].mxu0
  %v171 = vadd.f32 %v64, %v170
  %v172 = vpop.f32.mrb[0].mxu0
  %v173 = vpop.f32.mrb[0].mxu0
  %v174 = vadd.f32 %v69, %v173
  %v175 = vpop.f32.mrb[0].mxu0
  %176 = vmatprep.mubr.bf16.mxu0 0
  %177 = vmatmul.mubr.bf16.gmra.mrb[0].mxu0 %v119
  %v178 = vpop.f32.mrb[0].mxu0
  %v179 = vadd.f32 %v74, %v178
  %v180 = vpop.f32.mrb[0].mxu0
  %v181 = vpop.f32.mrb[0].mxu0
  %v182 = vadd.f32 %v79, %v181
  %v183 = vpop.f32.mrb[0].mxu0
  %184 = vmatprep.mubr.bf16.mxu0 0
  %185 = vmatmul.mubr.bf16.gmra.mrb[0].mxu0 %v122
  %v186 = vpop.f32.mrb[0].mxu0
  %v187 = vadd.f32 %v84, %v186
  %v188 = vpop.f32.mrb[0].mxu0
  %v189 = vpop.f32.mrb[0].mxu0
  %v190 = vadd.f32 %v89, %v189
  %v191 = vpop.f32.mrb[0].mxu0
  %192 = vdwg.mxu0
  %v193 = vmax.f32 %v163, 0.0
  %v194 = vmax.f32 %v166, 0.0
  %v195 = vmax.f32 %v171, 0.0
  %v196 = vmax.f32 %v174, 0.0
  %v197 = vmax.f32 %v179, 0.0
  %v198 = vmax.f32 %v182, 0.0
  %v199 = vmax.f32 %v187, 0.0
  %v200 = vmax.f32 %v190, 0.0
  %v201 = vld [vmem:[%s2] sm:$0xf]
  %v202 = vld [vmem:[%s2 + $0x4] sm:$0xf]
  %v203 = vld [vmem:[%s2 + $0x8] sm:$0xf]
  %v204 = vld [vmem:[%s2 + $0xc] sm:$0xf]
  %v205 = vld [vmem:[%s2 + $0x10] sm:$0xf]
  %v206 = vld [vmem:[%s2 + $0x14] sm:$0xf]
  %v207 = vld [vmem:[%s2 + $0x18] sm:$0xf]
  %v208 = vld [vmem:[%s2 + $0x1c] sm:$0xf]
  %v209 = vpack.c.bf16 %v194, %v193
  %v210 = vpack.c.bf16 %v196, %v195
  %v211 = vpack.c.bf16 %v198, %v197
  %v212 = vpack.c.bf16 %v200, %v199
  %v213 = vld [vmem:[%s6] sm:$0xff]
  %v214 = vld [vmem:[%s6 + $0x8] sm:$0xff]
  %v215 = vld [vmem:[%s6 + $0x10] sm:$0xff]
  %v216 = vld [vmem:[%s6 + $0x18] sm:$0xff]
  %v217 = vld [vmem:[%s6 + $0x20] sm:$0xff]
  %v218 = vld [vmem:[%s6 + $0x28] sm:$0xff]
  %v219 = vld [vmem:[%s6 + $0x30] sm:$0xff]
  %v220 = vld [vmem:[%s6 + $0x38] sm:$0xff]
  %222 = vset.pattern.permute.xlu0 0
  %223 = vperm.xlu0 %222, %v213
  %v224 = vpop.permute.xlu0 %223
  %227 = vset.pattern.permute.xlu0 0
  %228 = vperm.xlu0 %227, %v214
  %v229 = vpop.permute.xlu0 %228
  %232 = vset.pattern.permute.xlu0 0
  %233 = vperm.xlu0 %232, %v215
  %v234 = vpop.permute.xlu0 %233
  %237 = vset.pattern.permute.xlu0 0
  %238 = vperm.xlu0 %237, %v216
  %v239 = vpop.permute.xlu0 %238
  %242 = vset.pattern.permute.xlu0 0
  %243 = vperm.xlu0 %242, %v217
  %v244 = vpop.permute.xlu0 %243
  %247 = vset.pattern.permute.xlu0 0
  %248 = vperm.xlu0 %247, %v218
  %v249 = vpop.permute.xlu0 %248
  %252 = vset.pattern.permute.xlu0 0
  %253 = vperm.xlu0 %252, %v219
  %v254 = vpop.permute.xlu0 %253
  %257 = vset.pattern.permute.xlu0 0
  %258 = vperm.xlu0 %257, %v220
  %v259 = vpop.permute.xlu0 %258
  %v269 = vunpack.c.l.b16 %v201
  %v270 = vunpack.c.l.b16 %v202
  %v271 = vunpack.c.l.b16 %v203
  %v272 = vunpack.c.l.b16 %v204
  %v273 = vunpack.c.l.b16 %v205
  %v274 = vunpack.c.l.b16 %v206
  %v275 = vunpack.c.l.b16 %v207
  %v276 = vunpack.c.l.b16 %v208
  %v277 = vpack.c.b16 %v270, %v269
  %v278 = vpack.c.b16 %v272, %v271
  %v279 = vpack.c.b16 %v274, %v273
  %v280 = vpack.c.b16 %v276, %v275
  %vm281 = vcmask 523264
  %v283 = vsel %vm281, %v277, 0
  %v286 = vsel %vm281, %v278, 0
  %v289 = vsel %vm281, %v279, 0
  %v292 = vsel %vm281, %v280, 0
  %294 = vmatprep.subr.bf16.mxu0 0
  %295 = vmatpush1.bf16.msra.mxu0 %v209
  %296 = vmatprep.subr.bf16.mxu0 0
  %297 = vmatpush1.bf16.msra.mxu0 %v210
  %298 = vmatprep.subr.bf16.mxu0 0
  %299 = vmatpush1.bf16.msra.mxu0 %v211
  %300 = vmatprep.subr.bf16.mxu0 0
  %301 = vmatpush1.bf16.msra.mxu0 %v212
  %302 = vmatprep.subr.bf16.mxu0 0
  %303 = vmatpush1.bf16.msra.mxu0 0
  %304 = vmatprep.subr.bf16.mxu0 0
  %305 = vmatpush1.bf16.msra.mxu0 0
  %306 = vmatprep.subr.bf16.mxu0 0
  %307 = vmatpush1.bf16.msra.mxu0 0
  %308 = vmatprep.subr.bf16.mxu0 0
  %309 = vmatpush1.bf16.msra.mxu0 0
  %310 = vmatprep.subr.bf16.mxu0 0
  %311 = vmatpush1.bf16.msra.mxu0 0
  %312 = vmatprep.subr.bf16.mxu0 0
  %313 = vmatpush1.bf16.msra.mxu0 0
  %314 = vmatprep.subr.bf16.mxu0 0
  %315 = vmatpush1.bf16.msra.mxu0 0
  %316 = vmatprep.subr.bf16.mxu0 0
  %317 = vmatpush1.bf16.msra.mxu0 0
  %318 = vmatprep.subr.bf16.mxu0 0
  %319 = vmatpush1.bf16.msra.mxu0 0
  %320 = vmatprep.subr.bf16.mxu0 0
  %321 = vmatpush1.bf16.msra.mxu0 0
  %322 = vmatprep.subr.bf16.mxu0 0
  %323 = vmatpush1.bf16.msra.mxu0 0
  %324 = vmatprep.subr.bf16.mxu0 0
  %325 = vmatpush1.bf16.msra.mxu0 0
  %326 = vmatprep.mubr.bf16.mxu0 0
  %327 = vmatmul.mubr.bf16.gmra.mrb[0].mxu0 %v283
  %v328 = vpop.f32.mrb[0].mxu0
  %v329 = vadd.f32 %v224, %v328
  %v330 = vpop.f32.mrb[0].mxu0
  %v331 = vpop.f32.mrb[0].mxu0
  %v332 = vadd.f32 %v229, %v331
  %v333 = vpop.f32.mrb[0].mxu0
  %334 = vmatprep.mubr.bf16.mxu0 0
  %335 = vmatmul.mubr.bf16.gmra.mrb[0].mxu0 %v286
  %v336 = vpop.f32.mrb[0].mxu0
  %v337 = vadd.f32 %v234, %v336
  %v338 = vpop.f32.mrb[0].mxu0
  %v339 = vpop.f32.mrb[0].mxu0
  %v340 = vadd.f32 %v239, %v339
  %v341 = vpop.f32.mrb[0].mxu0
  %342 = vmatprep.mubr.bf16.mxu0 0
  %343 = vmatmul.mubr.bf16.gmra.mrb[0].mxu0 %v289
  %v344 = vpop.f32.mrb[0].mxu0
  %v345 = vadd.f32 %v244, %v344
  %v346 = vpop.f32.mrb[0].mxu0
  %v347 = vpop.f32.mrb[0].mxu0
  %v348 = vadd.f32 %v249, %v347
  %v349 = vpop.f32.mrb[0].mxu0
  %350 = vmatprep.mubr.bf16.mxu0 0
  %351 = vmatmul.mubr.bf16.gmra.mrb[0].mxu0 %v292
  %v352 = vpop.f32.mrb[0].mxu0
  %v353 = vadd.f32 %v254, %v352
  %v354 = vpop.f32.mrb[0].mxu0
  %v355 = vpop.f32.mrb[0].mxu0
  %v356 = vadd.f32 %v259, %v355
  %v357 = vpop.f32.mrb[0].mxu0
  %358 = vdwg.mxu0
  %v359 = vmax.f32 %v329, 0.0
  %v360 = vmax.f32 %v332, 0.0
  %v361 = vmax.f32 %v337, 0.0
  %v362 = vmax.f32 %v340, 0.0
  %v363 = vmax.f32 %v345, 0.0
  %v364 = vmax.f32 %v348, 0.0
  %v365 = vmax.f32 %v353, 0.0
  %v366 = vmax.f32 %v356, 0.0
  %v367 = vld [vmem:[%s3] sm:$0xf]
  %v368 = vld [vmem:[%s3 + $0x4] sm:$0xf]
  %v369 = vld [vmem:[%s3 + $0x8] sm:$0xf]
  %v370 = vld [vmem:[%s3 + $0xc] sm:$0xf]
  %v371 = vld [vmem:[%s3 + $0x10] sm:$0xf]
  %v372 = vld [vmem:[%s3 + $0x14] sm:$0xf]
  %v373 = vld [vmem:[%s3 + $0x18] sm:$0xf]
  %v374 = vld [vmem:[%s3 + $0x1c] sm:$0xf]
  %v375 = vpack.c.bf16 %v360, %v359
  %v376 = vpack.c.bf16 %v362, %v361
  %v377 = vpack.c.bf16 %v364, %v363
  %v378 = vpack.c.bf16 %v366, %v365
  %v379 = vld [vmem:[%s7] sm:$0xff]
  %v380 = vld [vmem:[%s7 + $0x8] sm:$0xff]
  %v381 = vld [vmem:[%s7 + $0x10] sm:$0xff]
  %v382 = vld [vmem:[%s7 + $0x18] sm:$0xff]
  %v383 = vld [vmem:[%s7 + $0x20] sm:$0xff]
  %v384 = vld [vmem:[%s7 + $0x28] sm:$0xff]
  %v385 = vld [vmem:[%s7 + $0x30] sm:$0xff]
  %v386 = vld [vmem:[%s7 + $0x38] sm:$0xff]
  %388 = vset.pattern.permute.xlu0 0
  %389 = vperm.xlu0 %388, %v379
  %v390 = vpop.permute.xlu0 %389
  %393 = vset.pattern.permute.xlu0 0
  %394 = vperm.xlu0 %393, %v380
  %v395 = vpop.permute.xlu0 %394
  %398 = vset.pattern.permute.xlu0 0
  %399 = vperm.xlu0 %398, %v381
  %v400 = vpop.permute.xlu0 %399
  %403 = vset.pattern.permute.xlu0 0
  %404 = vperm.xlu0 %403, %v382
  %v405 = vpop.permute.xlu0 %404
  %408 = vset.pattern.permute.xlu0 0
  %409 = vperm.xlu0 %408, %v383
  %v410 = vpop.permute.xlu0 %409
  %413 = vset.pattern.permute.xlu0 0
  %414 = vperm.xlu0 %413, %v384
  %v415 = vpop.permute.xlu0 %414
  %418 = vset.pattern.permute.xlu0 0
  %419 = vperm.xlu0 %418, %v385
  %v420 = vpop.permute.xlu0 %419
  %423 = vset.pattern.permute.xlu0 0
  %424 = vperm.xlu0 %423, %v386
  %v425 = vpop.permute.xlu0 %424
  %v435 = vunpack.c.l.b16 %v367
  %v436 = vunpack.c.l.b16 %v368
  %v437 = vunpack.c.l.b16 %v369
  %v438 = vunpack.c.l.b16 %v370
  %v439 = vunpack.c.l.b16 %v371
  %v440 = vunpack.c.l.b16 %v372
  %v441 = vunpack.c.l.b16 %v373
  %v442 = vunpack.c.l.b16 %v374
  %v443 = vpack.c.b16 %v436, %v435
  %v444 = vpack.c.b16 %v438, %v437
  %v445 = vpack.c.b16 %v440, %v439
  %v446 = vpack.c.b16 %v442, %v441
  %v448 = vsel %vm281, %v443, 0
  %v451 = vsel %vm281, %v444, 0
  %v454 = vsel %vm281, %v445, 0
  %v457 = vsel %vm281, %v446, 0
  %459 = vmatprep.subr.bf16.mxu0 0
  %460 = vmatpush1.bf16.msra.mxu0 %v375
  %461 = vmatprep.subr.bf16.mxu0 0
  %462 = vmatpush1.bf16.msra.mxu0 %v376
  %463 = vmatprep.subr.bf16.mxu0 0
  %464 = vmatpush1.bf16.msra.mxu0 %v377
  %465 = vmatprep.subr.bf16.mxu0 0
  %466 = vmatpush1.bf16.msra.mxu0 %v378
  %467 = vmatprep.subr.bf16.mxu0 0
  %468 = vmatpush1.bf16.msra.mxu0 0
  %469 = vmatprep.subr.bf16.mxu0 0
  %470 = vmatpush1.bf16.msra.mxu0 0
  %471 = vmatprep.subr.bf16.mxu0 0
  %472 = vmatpush1.bf16.msra.mxu0 0
  %473 = vmatprep.subr.bf16.mxu0 0
  %474 = vmatpush1.bf16.msra.mxu0 0
  %475 = vmatprep.subr.bf16.mxu0 0
  %476 = vmatpush1.bf16.msra.mxu0 0
  %477 = vmatprep.subr.bf16.mxu0 0
  %478 = vmatpush1.bf16.msra.mxu0 0
  %479 = vmatprep.subr.bf16.mxu0 0
  %480 = vmatpush1.bf16.msra.mxu0 0
  %481 = vmatprep.subr.bf16.mxu0 0
  %482 = vmatpush1.bf16.msra.mxu0 0
  %483 = vmatprep.subr.bf16.mxu0 0
  %484 = vmatpush1.bf16.msra.mxu0 0
  %485 = vmatprep.subr.bf16.mxu0 0
  %486 = vmatpush1.bf16.msra.mxu0 0
  %487 = vmatprep.subr.bf16.mxu0 0
  %488 = vmatpush1.bf16.msra.mxu0 0
  %489 = vmatprep.subr.bf16.mxu0 0
  %490 = vmatpush1.bf16.msra.mxu0 0
  %491 = vmatprep.mubr.bf16.mxu0 0
  %492 = vmatmul.mubr.bf16.gmra.mrb[0].mxu0 %v448
  %v493 = vpop.f32.mrb[0].mxu0
  %v494 = vadd.f32 %v390, %v493
  %v495 = vpop.f32.mrb[0].mxu0
  %v496 = vpop.f32.mrb[0].mxu0
  %v497 = vadd.f32 %v395, %v496
  %v498 = vpop.f32.mrb[0].mxu0
  %499 = vmatprep.mubr.bf16.mxu0 0
  %500 = vmatmul.mubr.bf16.gmra.mrb[0].mxu0 %v451
  %v501 = vpop.f32.mrb[0].mxu0
  %v502 = vadd.f32 %v400, %v501
  %v503 = vpop.f32.mrb[0].mxu0
  %v504 = vpop.f32.mrb[0].mxu0
  %v505 = vadd.f32 %v405, %v504
  %v506 = vpop.f32.mrb[0].mxu0
  %507 = vmatprep.mubr.bf16.mxu0 0
  %508 = vmatmul.mubr.bf16.gmra.mrb[0].mxu0 %v454
  %v509 = vpop.f32.mrb[0].mxu0
  %v510 = vadd.f32 %v410, %v509
  %v511 = vpop.f32.mrb[0].mxu0
  %v512 = vpop.f32.mrb[0].mxu0
  %v513 = vadd.f32 %v415, %v512
  %v514 = vpop.f32.mrb[0].mxu0
  %515 = vmatprep.mubr.bf16.mxu0 0
  %516 = vmatmul.mubr.bf16.gmra.mrb[0].mxu0 %v457
  %v517 = vpop.f32.mrb[0].mxu0
  %v518 = vadd.f32 %v420, %v517
  %v519 = vpop.f32.mrb[0].mxu0
  %v520 = vpop.f32.mrb[0].mxu0
  %v521 = vadd.f32 %v425, %v520
  %v522 = vpop.f32.mrb[0].mxu0
  %523 = vdwg.mxu0
  %v524 = vmax.f32 %v494, 0.0
  %v525 = vmax.f32 %v497, 0.0
  %v526 = vmax.f32 %v502, 0.0
  %v527 = vmax.f32 %v505, 0.0
  %v528 = vmax.f32 %v510, 0.0
  %v529 = vmax.f32 %v513, 0.0
  %v530 = vmax.f32 %v518, 0.0
  %v531 = vmax.f32 %v521, 0.0
  %v532 = vld [vmem:[%s4] sm:$0xf]
  %v533 = vpack.c.bf16 %v525, %v524
  %v534 = vpack.c.bf16 %v527, %v526
  %v535 = vpack.c.bf16 %v529, %v528
  %v536 = vpack.c.bf16 %v531, %v530
  %v537 = vld [vmem:[%s8] sm:$0xff]
  %539 = vset.pattern.permute.xlu0 0
  %540 = vperm.xlu0 %539, %v537
  %v541 = vpop.permute.xlu0 %540
  %v544 = vsel %vm281, %v532, 0
  %546 = vmatprep.subr.bf16.mxu0 0
  %547 = vmatpush1.bf16.msra.mxu0 %v533
  %548 = vmatprep.subr.bf16.mxu0 0
  %549 = vmatpush1.bf16.msra.mxu0 %v534
  %550 = vmatprep.subr.bf16.mxu0 0
  %551 = vmatpush1.bf16.msra.mxu0 %v535
  %552 = vmatprep.subr.bf16.mxu0 0
  %553 = vmatpush1.bf16.msra.mxu0 %v536
  %554 = vmatprep.subr.bf16.mxu0 0
  %555 = vmatpush1.bf16.msra.mxu0 0
  %556 = vmatprep.subr.bf16.mxu0 0
  %557 = vmatpush1.bf16.msra.mxu0 0
  %558 = vmatprep.subr.bf16.mxu0 0
  %559 = vmatpush1.bf16.msra.mxu0 0
  %560 = vmatprep.subr.bf16.mxu0 0
  %561 = vmatpush1.bf16.msra.mxu0 0
  %562 = vmatprep.subr.bf16.mxu0 0
  %563 = vmatpush1.bf16.msra.mxu0 0
  %564 = vmatprep.subr.bf16.mxu0 0
  %565 = vmatpush1.bf16.msra.mxu0 0
  %566 = vmatprep.subr.bf16.mxu0 0
  %567 = vmatpush1.bf16.msra.mxu0 0
  %568 = vmatprep.subr.bf16.mxu0 0
  %569 = vmatpush1.bf16.msra.mxu0 0
  %570 = vmatprep.subr.bf16.mxu0 0
  %571 = vmatpush1.bf16.msra.mxu0 0
  %572 = vmatprep.subr.bf16.mxu0 0
  %573 = vmatpush1.bf16.msra.mxu0 0
  %574 = vmatprep.subr.bf16.mxu0 0
  %575 = vmatpush1.bf16.msra.mxu0 0
  %576 = vmatprep.subr.bf16.mxu0 0
  %577 = vmatpush1.bf16.msra.mxu0 0
  %578 = vmatprep.mubr.bf16.mxu0 0
  %579 = vmatmul.mubr.bf16.gmra.mrb[0].mxu0 %v544
  %v580 = vpop.f32.mrb[0].mxu0
  %v581 = vadd.f32 %v541, %v580
  %v582 = vpop.f32.mrb[0].mxu0
  %v583 = vpop.f32.mrb[0].mxu0
  %v584 = vpop.f32.mrb[0].mxu0
  %585 = vdwg.mxu0
  %586 = vst [vmem:[%s9] sm:$0xff] %v581
  // Predicated region
  $region38: #{dqn_forward.1} parent=0 // pred_check
    _
  $region39: #{dqn_forward.1} parent=0 // pred_check_branch
    %588 = sbr.rel (0) target = $region41
  $region40: #{dqn_forward.1} parent=0 // pred_region
    _
  $region41: #{dqn_forward.1} parent=0 // pred_fallthru
    _
  // Predicated region
  $region42: #{dqn_forward.1} parent=0 // pred_check
    _
  $region43: #{dqn_forward.1} parent=0 // pred_check_branch
    %590 = sbr.rel (0) target = $region45
  $region44: #{dqn_forward.1} parent=0 // pred_region
    _
  $region45: #{dqn_forward.1} parent=0 // pred_fallthru
    _

</llo_original>
